<compile_context>
chip_gen: v6e
topology: v6e:2x2x1
jax: 0.10.0
libtpu: 0.0.40
codegen_flags: <defaults>
</compile_context>

<pallas_src>
import functools
from typing import List, NamedTuple, Tuple

import jax
import jax.numpy as jnp
from jax.experimental import pallas as pl
from jax.experimental.pallas import tpu as pltpu

_LANE = 128      # lane (last-dim) granularity
_SUBLANE = 8     # sublane (second-to-last-dim) granularity


def _round_up(x, m):
    return (x + m - 1) // m * m


# ----------------------------------------------------------------- device info
_DEV_INFO = None


def _device_info():
    """Returns (physical VMEM bytes per TensorCore, TensorCores per chip)."""
    global _DEV_INFO
    if _DEV_INFO is None:
        vmem = 128 << 20
        cores = 1
        try:
            info = pltpu.get_tpu_info()
            vmem = int(getattr(info, "vmem_capacity_bytes", vmem))
            for name in ("num_tensorcores", "tensorcores_per_chip",
                         "num_cores", "cores_per_chip"):
                v = getattr(info, name, None)
                if v:
                    cores = int(v)
                    break
        except Exception:
            pass
        if cores == 1 and vmem <= (64 << 20):
            cores = 2   # v7x signature: 64 MiB VMEM per TC, 2 TCs per chip
        _DEV_INFO = (vmem, cores)
    return _DEV_INFO


# ---------------------------------------------------------------- param prep
class PreparedMLP(NamedTuple):
    weights: Tuple[jax.Array, ...]   # padded (kp, np), param_dtype
    biases: Tuple[jax.Array, ...]    # padded (1, np), f32; len == num_layers-1
    dims: Tuple[int, ...]            # unpadded layer-boundary dims
    dims_pad: Tuple[int, ...]        # lane-padded layer-boundary dims


def prepare_mlp_params(params, param_dtype="bfloat16"):
    """Pad (lane-align) + cast weights ONCE, hoisted out of the forward call."""
    w_dtype = jnp.dtype(param_dtype)
    num_layers = len(params)
    dims = [params[0][0].shape[0]] + [w.shape[1] for (w, _) in params]
    dims_pad = [_round_up(d, _LANE) for d in dims]
    weights, biases = [], []
    for i, (w, b) in enumerate(params):
        kp, np_ = dims_pad[i], dims_pad[i + 1]
        w_p = jnp.pad(w, ((0, kp - w.shape[0]), (0, np_ - w.shape[1]))).astype(w_dtype)
        weights.append(w_p)
        if i < num_layers - 1:
            b_p = jnp.pad(b, ((0, 0), (0, np_ - b.shape[1]))).astype(jnp.float32)
            biases.append(b_p)
    return PreparedMLP(tuple(weights), tuple(biases), tuple(dims), tuple(dims_pad))


# ------------------------------------------------------------ fused MLP kernel
def _make_fused_mlp_kernel(num_layers):
    """refs = (x, w0, b0, ..., w_{L-2}, b_{L-2}, w_{L-1}, out).

    Hidden layers: y = relu(x @ W + b); dropout = identity (eval mode).
    Final layer:   y = x @ W (bias-free, no activation; activate_last=False).
    """

    def kernel(*refs):
        x_ref = refs[0]
        o_ref = refs[-1]
        h = x_ref[...].astype(jnp.float32)
        idx = 1
        for _ in range(num_layers - 1):
            w_ref, b_ref = refs[idx], refs[idx + 1]
            idx += 2
            acc = jnp.dot(h.astype(w_ref.dtype), w_ref[...],
                          preferred_element_type=jnp.float32)
            # f32 bias-add + ReLU epilogue: co-issues on the VPU under the MXU
            # pushes; also avoids the missing bf16 VPU path on v5e.
            h = jnp.maximum(acc + b_ref[...], 0.0)
            # Dropout: identity in inference mode.
        w_ref = refs[idx]
        out = jnp.dot(h.astype(w_ref.dtype), w_ref[...],
                      preferred_element_type=jnp.float32)
        o_ref[...] = out.astype(o_ref.dtype)

    return kernel


@functools.partial(jax.jit, static_argnames=("tile_m", "weight_buffers"))
def _fused_call(x_pad, weights, biases, *, tile_m, weight_buffers):
    num_layers = len(weights)
    m_pad, in_pad = x_pad.shape
    n_out_pad = weights[-1].shape[1]
    out_dtype = x_pad.dtype

    kw = {}
    if weight_buffers == 1:
        # Constant index_map -> no second pipeline buffer needed.
        kw = dict(pipeline_mode=pl.Buffered(1))

    flat = [x_pad]
    in_specs = [pl.BlockSpec((tile_m, in_pad), lambda i: (i, 0))]
    for li in range(num_layers):
        w = weights[li]
        flat.append(w)
        in_specs.append(pl.BlockSpec(w.shape, lambda i: (0, 0), **kw))
        if li < num_layers - 1:
            b = biases[li]
            flat.append(b)
            in_specs.append(pl.BlockSpec(b.shape, lambda i: (0, 0), **kw))

    grid = (m_pad // tile_m,)
    out_specs = pl.BlockSpec((tile_m, n_out_pad), lambda i: (i, 0))

    # VMEM budget: weights/biases x weight_buffers, double-buffered x/out
    # tiles, f32 activation temporaries.  Clamped to physical VMEM.
    phys_vmem, _ = _device_info()
    itemsize = x_pad.dtype.itemsize
    dims_pad = [in_pad] + [w.shape[1] for w in weights]
    w_bytes = sum(int(w.size) * w.dtype.itemsize for w in weights)
    b_bytes = sum(int(b.size) * b.dtype.itemsize for b in biases)
    io_bytes = 2 * tile_m * (in_pad + n_out_pad) * itemsize
    act_bytes = 2 * tile_m * max(dims_pad) * 4
    vmem_limit = weight_buffers * (w_bytes + b_bytes) + io_bytes + act_bytes + (8 << 20)
    vmem_limit = int(min(max(vmem_limit, 32 << 20), int(0.9 * phys_vmem)))

    flops = sum(2 * m_pad * dims_pad[i] * dims_pad[i + 1] for i in range(num_layers))
    bytes_accessed = (m_pad * in_pad * itemsize + w_bytes + b_bytes
                      + m_pad * n_out_pad * itemsize)

    return pl.pallas_call(
        _make_fused_mlp_kernel(num_layers),
        out_shape=jax.ShapeDtypeStruct((m_pad, n_out_pad), out_dtype),
        grid=grid,
        in_specs=in_specs,
        out_specs=out_specs,
        compiler_params=pltpu.CompilerParams(
            dimension_semantics=("parallel",),
            vmem_limit_bytes=vmem_limit),
        cost_estimate=pl.CostEstimate(
            flops=int(flops), transcendentals=0,
            bytes_accessed=int(bytes_accessed)),
    )(*flat)


# -------------------------------------------- per-layer (M,N,K)-tiled fallback
def _linear_layer_kernel(x_ref, w_ref, b_ref, o_ref, acc_ref, *, relu):
    @pl.when(pl.program_id(2) == 0)
    def _():
        acc_ref[...] = jnp.zeros_like(acc_ref)

    acc_ref[...] += jnp.dot(x_ref[...].astype(w_ref.dtype), w_ref[...],
                            preferred_element_type=jnp.float32)

    @pl.when(pl.program_id(2) == pl.num_programs(2) - 1)
    def _():
        y = acc_ref[...] + b_ref[...]
        if relu:
            y = jnp.maximum(y, 0.0)
        o_ref[...] = y.astype(o_ref.dtype)


def _pick_tile(size, unit, cap):
    """Largest multiple of `unit` <= cap that exactly divides round_up(size, unit)."""
    padded = _round_up(size, unit)
    q = padded // unit
    best = 1
    for d in range(1, min(q, max(1, cap // unit)) + 1):
        if q % d == 0:
            best = d
    return unit * best


def _tiled_linear(x_pad, w_pad, b_pad, *, relu, out_dtype, tm, tn, tk):
    m_pad, k_pad = x_pad.shape
    n_pad = w_pad.shape[1]
    grid = (m_pad // tm, n_pad // tn, k_pad // tk)
    phys_vmem, _ = _device_info()
    vmem_limit = (2 * (tm * tk * x_pad.dtype.itemsize
                       + tk * tn * w_pad.dtype.itemsize
                       + tn * 4
                       + tm * tn * jnp.dtype(out_dtype).itemsize)
                  + tm * tn * 4 + (4 << 20))
    vmem_limit = int(min(max(vmem_limit, 16 << 20), int(0.9 * phys_vmem)))
    return pl.pallas_call(
        functools.partial(_linear_layer_kernel, relu=relu),
        out_shape=jax.ShapeDtypeStruct((m_pad, n_pad), out_dtype),
        grid=grid,
        in_specs=[pl.BlockSpec((tm, tk), lambda i, j, k: (i, k)),
                  pl.BlockSpec((tk, tn), lambda i, j, k: (k, j)),
                  pl.BlockSpec((1, tn), lambda i, j, k: (0, j))],
        out_specs=pl.BlockSpec((tm, tn), lambda i, j, k: (i, j)),
        scratch_shapes=[pltpu.VMEM((tm, tn), jnp.float32)],
        compiler_params=pltpu.CompilerParams(
            dimension_semantics=("parallel", "parallel", "arbitrary"),
            vmem_limit_bytes=vmem_limit),
    )(x_pad, w_pad, b_pad)


@jax.jit
def _layer_tiled_forward(x_pad, weights, biases):
    """Fallback when the weight stack won't stay VMEM-resident: per-layer
    (M,N,K)-tiled matmul streaming weight blocks; activations round-trip HBM
    between layers (weight traffic dominates in this regime)."""
    num_layers = len(weights)
    out_dtype = x_pad.dtype
    m_pad = x_pad.shape[0]
    h = x_pad
    for li in range(num_layers):
        w = weights[li]
        k_pad, n_pad = w.shape
        last = li == num_layers - 1
        b = biases[li] if not last else jnp.zeros((1, n_pad), jnp.float32)
        tm = _pick_tile(m_pad, _SUBLANE, 256)
        tn = _pick_tile(n_pad, _LANE, 512)
        tk = _pick_tile(k_pad, _LANE, 512)
        h = _tiled_linear(h, w, b, relu=not last,
                          out_dtype=out_dtype if last else w.dtype,
                          tm=tm, tn=tn, tk=tk)
        # Dropout: identity in inference mode.
    return h


# -------------------------------------------------------------------- wrapper
def _choose_tile_m(batch, num_cores):
    b8 = _round_up(batch, _SUBLANE)
    if num_cores <= 1:
        # Single TensorCore (v5e/v6e): grid is a serial loop -> big tiles.
        return min(512, b8)
    # Dual-core (v7x): even grid with >= 2 tiles per core for balance.
    target_tiles = 2 * num_cores
    tile = _round_up(max(pl.cdiv(b8, target_tiles), _SUBLANE), _SUBLANE)
    return min(tile, 256)


def mlp_forward(x, prep: PreparedMLP, *, tile_m=None, force_layer_tiled=False):
    """MLP forward: [Linear+bias -> ReLU -> Dropout(eval=id)]* -> Linear(no bias)."""
    batch, in_dim = x.shape
    assert in_dim == prep.dims[0]
    in_pad = prep.dims_pad[0]
    out_dim = prep.dims[-1]

    phys_vmem, num_cores = _device_info()
    w_bytes = sum(int(w.size) * w.dtype.itemsize for w in prep.weights)
    b_bytes = sum(int(b.size) * b.dtype.itemsize for b in prep.biases)

    # If the weight stack can't stay VMEM-resident, stream it per layer.
    if force_layer_tiled or (w_bytes + b_bytes > 0.45 * phys_vmem):
        m_pad = _round_up(batch, _SUBLANE)
        x_in = x if (m_pad, in_pad) == (batch, in_dim) else jnp.pad(
            x, ((0, m_pad - batch), (0, in_pad - in_dim)))
        out_pad = _layer_tiled_forward(x_in, prep.weights, prep.biases)
        return out_pad[:batch, :out_dim]

    if tile_m is None:
        tile_m = _choose_tile_m(batch, num_cores)
    tile_m = int(min(_round_up(int(tile_m), _SUBLANE), _round_up(batch, _SUBLANE)))

    # Auto-shrink tile_m if the single-buffered residency estimate approaches
    # physical VMEM (matters on v7x's 64 MiB).
    def _resident(tm):
        io = 2 * tm * (in_pad + prep.dims_pad[-1]) * x.dtype.itemsize
        act = 2 * tm * max(prep.dims_pad) * 4
        return w_bytes + b_bytes + io + act

    while tile_m > _SUBLANE and _resident(tile_m) > 0.7 * phys_vmem:
        tile_m = max(_SUBLANE, _round_up(tile_m // 2, _SUBLANE))

    m_pad = _round_up(batch, tile_m)
    x_in = x if (m_pad, in_pad) == (batch, in_dim) else jnp.pad(
        x, ((0, m_pad - batch), (0, in_pad - in_dim)))

    try:
        out_pad = _fused_call(x_in, prep.weights, prep.biases,
                              tile_m=tile_m, weight_buffers=1)
    except Exception:
        # Older JAX without BlockSpec(pipeline_mode=...): default double-buffering.
        out_pad = _fused_call(x_in, prep.weights, prep.biases,
                              tile_m=tile_m, weight_buffers=2)
    return out_pad[:batch, :out_dim]


# ------------------------------------------------------------- init & reference
def init_mlp_params(key, hidden_dims: List[int]):
    """torch.nn.Linear-style init; weights stored transposed (in_dim, out_dim).
    Bias only on non-final layers (bias = i < num_layers - 1, as in the spec)."""
    num_layers = len(hidden_dims) - 1
    params = []
    for i in range(num_layers):
        key, kw, kb = jax.random.split(key, 3)
        fan_in, fan_out = hidden_dims[i], hidden_dims[i + 1]
        bound = 1.0 / jnp.sqrt(fan_in)
        w = jax.random.uniform(kw, (fan_in, fan_out), jnp.float32,
                               minval=-bound, maxval=bound)
        b = (jax.random.uniform(kb, (1, fan_out), jnp.float32,
                                minval=-bound, maxval=bound)
             if i < num_layers - 1 else None)
        params.append((w, b))
    return params


def mlp_reference(x, params):
    """Pure-JAX reference for validation."""
    num_layers = len(params)
    h = x
    for i, (w, b) in enumerate(params):
        h = h @ w
        if i < num_layers - 1:
            h = jnp.maximum(h + b, 0.0)
    return h


if __name__ == "__main__":
    key = jax.random.PRNGKey(0)
    hidden_dims = [32, 64, 48, 16]   # 3 Linear layers; last one bias-free
    batch = 8

    key, kx, kp = jax.random.split(key, 3)
    x = jax.random.normal(kx, (batch, hidden_dims[0]), jnp.float32)
    params = init_mlp_params(kp, hidden_dims)
    ref = mlp_reference(x, params)

    # Default path: bf16 MXU inputs (weights + activations), f32 accumulation.
    prep_bf16 = prepare_mlp_params(params, "bfloat16")
    out = jax.block_until_ready(mlp_forward(x, prep_bf16))
    assert out.shape == (batch, hidden_dims[-1])
    assert jnp.allclose(out, ref, atol=5e-2, rtol=5e-2), "bf16 fused mismatch"

    # f32 reference-precision path.
    prep_f32 = prepare_mlp_params(params, "float32")
    out_f32 = jax.block_until_ready(mlp_forward(x, prep_f32))
    assert jnp.allclose(out_f32, ref, atol=1e-4, rtol=1e-4), "f32 fused mismatch"

    # Multi-tile batch path (ragged batch exercises padding + batch tiling).
    key, kx2 = jax.random.split(key)
    x_big = jax.random.normal(kx2, (300, hidden_dims[0]), jnp.float32)
    ref_big = mlp_reference(x_big, params)
    out_big = jax.block_until_ready(mlp_forward(x_big, prep_f32, tile_m=128))
    assert out_big.shape == (300, hidden_dims[-1])
    assert jnp.allclose(out_big, ref_big, atol=1e-4, rtol=1e-4), "tiled mismatch"

    # Layer-tiled fallback (auto-selected when resident weights exceed the
    # per-generation VMEM budget); forced here to exercise it at toy sizes.
    out_fb = jax.block_until_ready(
        mlp_forward(x_big, prep_f32, force_layer_tiled=True))
    assert jnp.allclose(out_fb, ref_big, atol=1e-4, rtol=1e-4), "fallback mismatch"

    print("KERNEL_OK")
</pallas_src>

<mosaic_0001>
module attributes {stable_mosaic.version = 11 : i64} {
  func.func @kernel(%arg0: i32, %arg1: memref<8x128xf32, #tpu.memory_space<vmem>>, %arg2: memref<128x128xbf16, #tpu.memory_space<vmem>>, %arg3: memref<1x128xf32, #tpu.memory_space<vmem>>, %arg4: memref<128x128xbf16, #tpu.memory_space<vmem>>, %arg5: memref<1x128xf32, #tpu.memory_space<vmem>>, %arg6: memref<128x128xbf16, #tpu.memory_space<vmem>>, %arg7: memref<8x128xf32, #tpu.memory_space<vmem>>) attributes {dimension_semantics = [#tpu.dimension_semantics<parallel>], iteration_bounds = array<i64: 1>, scalar_prefetch = 0 : i64, scratch_operands = 0 : i64, tpu.core_type = #tpu.core_type<tc>, window_params = [{transform_indices = @transform_0, window_bounds = array<i64: 8, 128>}, {pipeline_mode = #tpu.pipeline_mode<synchronous>, transform_indices = @transform_1, window_bounds = array<i64: 128, 128>}, {pipeline_mode = #tpu.pipeline_mode<synchronous>, transform_indices = @transform_2, window_bounds = array<i64: 1, 128>}, {pipeline_mode = #tpu.pipeline_mode<synchronous>, transform_indices = @transform_3, window_bounds = array<i64: 128, 128>}, {pipeline_mode = #tpu.pipeline_mode<synchronous>, transform_indices = @transform_4, window_bounds = array<i64: 1, 128>}, {pipeline_mode = #tpu.pipeline_mode<synchronous>, transform_indices = @transform_5, window_bounds = array<i64: 128, 128>}, {transform_indices = @transform_6, window_bounds = array<i64: 8, 128>}]} {
    %c0 = arith.constant 0 : index
    %c0_0 = arith.constant 0 : index
    %0 = vector.load %arg1[%c0, %c0_0] : memref<8x128xf32, #tpu.memory_space<vmem>>, vector<8x128xf32>
    %1 = arith.truncf %0 : vector<8x128xf32> to vector<8x128xbf16>
    %c0_1 = arith.constant 0 : index
    %c0_2 = arith.constant 0 : index
    %2 = vector.load %arg2[%c0_1, %c0_2] : memref<128x128xbf16, #tpu.memory_space<vmem>>, vector<128x128xbf16>
    %cst = arith.constant dense<0.000000e+00> : vector<8x128xf32>
    %3 = tpu.matmul %1, %2, %cst {dimension_numbers = #tpu.dot_dimension_numbers<[1], [0], [0], [1], [0, 0, 1, 1], [], []>} : vector<8x128xbf16>, vector<128x128xbf16>, vector<8x128xf32> -> vector<8x128xf32>
    %c0_3 = arith.constant 0 : index
    %c0_4 = arith.constant 0 : index
    %4 = vector.load %arg3[%c0_3, %c0_4] : memref<1x128xf32, #tpu.memory_space<vmem>>, vector<1x128xf32>
    %5 = vector.broadcast %4 : vector<1x128xf32> to vector<8x128xf32>
    %6 = arith.addf %3, %5 : vector<8x128xf32>
    %cst_5 = arith.constant 0.000000e+00 : f32
    %7 = vector.broadcast %cst_5 : f32 to vector<8x128xf32>
    %8 = arith.maximumf %6, %7 : vector<8x128xf32>
    %9 = arith.truncf %8 : vector<8x128xf32> to vector<8x128xbf16>
    %c0_6 = arith.constant 0 : index
    %c0_7 = arith.constant 0 : index
    %10 = vector.load %arg4[%c0_6, %c0_7] : memref<128x128xbf16, #tpu.memory_space<vmem>>, vector<128x128xbf16>
    %cst_8 = arith.constant dense<0.000000e+00> : vector<8x128xf32>
    %11 = tpu.matmul %9, %10, %cst_8 {dimension_numbers = #tpu.dot_dimension_numbers<[1], [0], [0], [1], [0, 0, 1, 1], [], []>} : vector<8x128xbf16>, vector<128x128xbf16>, vector<8x128xf32> -> vector<8x128xf32>
    %c0_9 = arith.constant 0 : index
    %c0_10 = arith.constant 0 : index
    %12 = vector.load %arg5[%c0_9, %c0_10] : memref<1x128xf32, #tpu.memory_space<vmem>>, vector<1x128xf32>
    %13 = vector.broadcast %12 : vector<1x128xf32> to vector<8x128xf32>
    %14 = arith.addf %11, %13 : vector<8x128xf32>
    %cst_11 = arith.constant 0.000000e+00 : f32
    %15 = vector.broadcast %cst_11 : f32 to vector<8x128xf32>
    %16 = arith.maximumf %14, %15 : vector<8x128xf32>
    %17 = arith.truncf %16 : vector<8x128xf32> to vector<8x128xbf16>
    %c0_12 = arith.constant 0 : index
    %c0_13 = arith.constant 0 : index
    %18 = vector.load %arg6[%c0_12, %c0_13] : memref<128x128xbf16, #tpu.memory_space<vmem>>, vector<128x128xbf16>
    %cst_14 = arith.constant dense<0.000000e+00> : vector<8x128xf32>
    %19 = tpu.matmul %17, %18, %cst_14 {dimension_numbers = #tpu.dot_dimension_numbers<[1], [0], [0], [1], [0, 0, 1, 1], [], []>} : vector<8x128xbf16>, vector<128x128xbf16>, vector<8x128xf32> -> vector<8x128xf32>
    %c0_15 = arith.constant 0 : index
    %c0_16 = arith.constant 0 : index
    %20 = vector.load %arg7[%c0_15, %c0_16] : memref<8x128xf32, #tpu.memory_space<vmem>>, vector<8x128xf32>
    tpu.vector_store %arg7[%c0_15, %c0_16], %19 {strides = array<i32>} : memref<8x128xf32, #tpu.memory_space<vmem>>, vector<8x128xf32>,
    return
  }
  func.func @transform_0(%arg0: i32) -> (i32, i32) {
    %c0_i32 = arith.constant 0 : i32
    %c0_i32_0 = arith.constant 0 : i32
    return %arg0, %c0_i32 : i32, i32
  }
  func.func @transform_1(%arg0: i32) -> (i32, i32) {
    %c0_i32 = arith.constant 0 : i32
    %c0_i32_0 = arith.constant 0 : i32
    %c0_i32_1 = arith.constant 0 : i32
    return %c0_i32, %c0_i32_0 : i32, i32
  }
  func.func @transform_2(%arg0: i32) -> (i32, i32) {
    %c0_i32 = arith.constant 0 : i32
    %c0_i32_0 = arith.constant 0 : i32
    %c0_i32_1 = arith.constant 0 : i32
    return %c0_i32, %c0_i32_0 : i32, i32
  }
  func.func @transform_3(%arg0: i32) -> (i32, i32) {
    %c0_i32 = arith.constant 0 : i32
    %c0_i32_0 = arith.constant 0 : i32
    %c0_i32_1 = arith.constant 0 : i32
    return %c0_i32, %c0_i32_0 : i32, i32
  }
  func.func @transform_4(%arg0: i32) -> (i32, i32) {
    %c0_i32 = arith.constant 0 : i32
    %c0_i32_0 = arith.constant 0 : i32
    %c0_i32_1 = arith.constant 0 : i32
    return %c0_i32, %c0_i32_0 : i32, i32
  }
  func.func @transform_5(%arg0: i32) -> (i32, i32) {
    %c0_i32 = arith.constant 0 : i32
    %c0_i32_0 = arith.constant 0 : i32
    %c0_i32_1 = arith.constant 0 : i32
    return %c0_i32, %c0_i32_0 : i32, i32
  }
  func.func @transform_6(%arg0: i32) -> (i32, i32) {
    %c0_i32 = arith.constant 0 : i32
    %c0_i32_0 = arith.constant 0 : i32
    return %arg0, %c0_i32 : i32, i32
  }
}

module attributes {stable_mosaic.version = 11 : i64} {
  func.func @kernel(%arg0: i32, %arg1: memref<8x128xf32, #tpu.memory_space<vmem>>, %arg2: memref<128x128xbf16, #tpu.memory_space<vmem>>, %arg3: memref<1x128xf32, #tpu.memory_space<vmem>>, %arg4: memref<128x128xbf16, #tpu.memory_space<vmem>>, %arg5: memref<1x128xf32, #tpu.memory_space<vmem>>, %arg6: memref<128x128xbf16, #tpu.memory_space<vmem>>, %arg7: memref<8x128xf32, #tpu.memory_space<vmem>>) attributes {dimension_semantics = [#tpu.dimension_semantics<parallel>], iteration_bounds = array<i64: 1>, scalar_prefetch = 0 : i64, scratch_operands = 0 : i64, tpu.core_type = #tpu.core_type<tc>, window_params = [{transform_indices = @transform_0, window_bounds = array<i64: 8, 128>}, {pipeline_mode = #tpu.pipeline_mode<synchronous>, transform_indices = @transform_1, window_bounds = array<i64: 128, 128>}, {pipeline_mode = #tpu.pipeline_mode<synchronous>, transform_indices = @transform_2, window_bounds = array<i64: 1, 128>}, {pipeline_mode = #tpu.pipeline_mode<synchronous>, transform_indices = @transform_3, window_bounds = array<i64: 128, 128>}, {pipeline_mode = #tpu.pipeline_mode<synchronous>, transform_indices = @transform_4, window_bounds = array<i64: 1, 128>}, {pipeline_mode = #tpu.pipeline_mode<synchronous>, transform_indices = @transform_5, window_bounds = array<i64: 128, 128>}, {transform_indices = @transform_6, window_bounds = array<i64: 8, 128>}]} {
    %c0 = arith.constant 0 : index
    %c0_0 = arith.constant 0 : index
    %0 = vector.load %arg1[%c0, %c0_0] : memref<8x128xf32, #tpu.memory_space<vmem>>, vector<8x128xf32>
    %1 = arith.truncf %0 : vector<8x128xf32> to vector<8x128xbf16>
    %c0_1 = arith.constant 0 : index
    %c0_2 = arith.constant 0 : index
    %2 = vector.load %arg2[%c0_1, %c0_2] : memref<128x128xbf16, #tpu.memory_space<vmem>>, vector<128x128xbf16>
    %cst = arith.constant dense<0.000000e+00> : vector<8x128xf32>
    %3 = tpu.matmul %1, %2, %cst {dimension_numbers = #tpu.dot_dimension_numbers<[1], [0], [0], [1], [0, 0, 1, 1], [], []>} : vector<8x128xbf16>, vector<128x128xbf16>, vector<8x128xf32> -> vector<8x128xf32>
    %c0_3 = arith.constant 0 : index
    %c0_4 = arith.constant 0 : index
    %4 = vector.load %arg3[%c0_3, %c0_4] : memref<1x128xf32, #tpu.memory_space<vmem>>, vector<1x128xf32>
    %5 = vector.broadcast %4 : vector<1x128xf32> to vector<8x128xf32>
    %6 = arith.addf %3, %5 : vector<8x128xf32>
    %cst_5 = arith.constant 0.000000e+00 : f32
    %7 = vector.broadcast %cst_5 : f32 to vector<8x128xf32>
    %8 = arith.maximumf %6, %7 : vector<8x128xf32>
    %9 = arith.truncf %8 : vector<8x128xf32> to vector<8x128xbf16>
    %c0_6 = arith.constant 0 : index
    %c0_7 = arith.constant 0 : index
    %10 = vector.load %arg4[%c0_6, %c0_7] : memref<128x128xbf16, #tpu.memory_space<vmem>>, vector<128x128xbf16>
    %cst_8 = arith.constant dense<0.000000e+00> : vector<8x128xf32>
    %11 = tpu.matmul %9, %10, %cst_8 {dimension_numbers = #tpu.dot_dimension_numbers<[1], [0], [0], [1], [0, 0, 1, 1], [], []>} : vector<8x128xbf16>, vector<128x128xbf16>, vector<8x128xf32> -> vector<8x128xf32>
    %c0_9 = arith.constant 0 : index
    %c0_10 = arith.constant 0 : index
    %12 = vector.load %arg5[%c0_9, %c0_10] : memref<1x128xf32, #tpu.memory_space<vmem>>, vector<1x128xf32>
    %13 = vector.broadcast %12 : vector<1x128xf32> to vector<8x128xf32>
    %14 = arith.addf %11, %13 : vector<8x128xf32>
    %cst_11 = arith.constant 0.000000e+00 : f32
    %15 = vector.broadcast %cst_11 : f32 to vector<8x128xf32>
    %16 = arith.maximumf %14, %15 : vector<8x128xf32>
    %17 = arith.truncf %16 : vector<8x128xf32> to vector<8x128xbf16>
    %c0_12 = arith.constant 0 : index
    %c0_13 = arith.constant 0 : index
    %18 = vector.load %arg6[%c0_12, %c0_13] : memref<128x128xbf16, #tpu.memory_space<vmem>>, vector<128x128xbf16>
    %cst_14 = arith.constant dense<0.000000e+00> : vector<8x128xf32>
    %19 = tpu.matmul %17, %18, %cst_14 {dimension_numbers = #tpu.dot_dimension_numbers<[1], [0], [0], [1], [0, 0, 1, 1], [], []>} : vector<8x128xbf16>, vector<128x128xbf16>, vector<8x128xf32> -> vector<8x128xf32>
    %c0_15 = arith.constant 0 : index
    %c0_16 = arith.constant 0 : index
    %20 = vector.load %arg7[%c0_15, %c0_16] : memref<8x128xf32, #tpu.memory_space<vmem>>, vector<8x128xf32>
    tpu.vector_store %arg7[%c0_15, %c0_16], %19 {strides = array<i32>} : memref<8x128xf32, #tpu.memory_space<vmem>>, vector<8x128xf32>,
    return
  }
  func.func @transform_0(%arg0: i32) -> (i32, i32) {
    %c0_i32 = arith.constant 0 : i32
    %c0_i32_0 = arith.constant 0 : i32
    return %arg0, %c0_i32 : i32, i32
  }
  func.func @transform_1(%arg0: i32) -> (i32, i32) {
    %c0_i32 = arith.constant 0 : i32
    %c0_i32_0 = arith.constant 0 : i32
    %c0_i32_1 = arith.constant 0 : i32
    return %c0_i32, %c0_i32_0 : i32, i32
  }
  func.func @transform_2(%arg0: i32) -> (i32, i32) {
    %c0_i32 = arith.constant 0 : i32
    %c0_i32_0 = arith.constant 0 : i32
    %c0_i32_1 = arith.constant 0 : i32
    return %c0_i32, %c0_i32_0 : i32, i32
  }
  func.func @transform_3(%arg0: i32) -> (i32, i32) {
    %c0_i32 = arith.constant 0 : i32
    %c0_i32_0 = arith.constant 0 : i32
    %c0_i32_1 = arith.constant 0 : i32
    return %c0_i32, %c0_i32_0 : i32, i32
  }
  func.func @transform_4(%arg0: i32) -> (i32, i32) {
    %c0_i32 = arith.constant 0 : i32
    %c0_i32_0 = arith.constant 0 : i32
    %c0_i32_1 = arith.constant 0 : i32
    return %c0_i32, %c0_i32_0 : i32, i32
  }
  func.func @transform_5(%arg0: i32) -> (i32, i32) {
    %c0_i32 = arith.constant 0 : i32
    %c0_i32_0 = arith.constant 0 : i32
    %c0_i32_1 = arith.constant 0 : i32
    return %c0_i32, %c0_i32_0 : i32, i32
  }
  func.func @transform_6(%arg0: i32) -> (i32, i32) {
    %c0_i32 = arith.constant 0 : i32
    %c0_i32_0 = arith.constant 0 : i32
    return %arg0, %c0_i32 : i32, i32
  }
}

</mosaic_0001>

<llo_original>
// kernel: _fused_call.1
$region0: #{_fused_call.1}
  #allocation0 [shape = 'u32[]', space=smem, size = 0x4, offset = 0x4, fixed_abs, tag = 'smem constant byte address 0x4 - core index']
  #allocation1 [shape = 'u32[144,128]{1,0:T(1,128)}', space=vmem, size = 0x12000, scoped, tag = 'internal scratch']
  %s0 = inlined_call_operand.hbm [shape: f32[8,128], index: 0, kind: input, shape index: {}]
  %s1 = inlined_call_operand.hbm [shape: bf16[128,128], index: 1, kind: input, shape index: {}]
  %s2 = inlined_call_operand.vmem [shape: f32[1,128], index: 2, kind: input, shape index: {}]
  %s3 = inlined_call_operand.hbm [shape: bf16[128,128], index: 3, kind: input, shape index: {}]
  %s4 = inlined_call_operand.vmem [shape: f32[1,128], index: 4, kind: input, shape index: {}]
  %s5 = inlined_call_operand.hbm [shape: bf16[128,128], index: 5, kind: input, shape index: {}]
  %s6 = inlined_call_operand.hbm [shape: f32[8,128], index: 6, kind: output, shape index: {}]
  %s7 = sld [smem:[#allocation0]]
  $region50: #{_fused_call.1} parent=0
    _
  %s9 = ssub.s32 1, %s7
  %s10 = scalar_select 0, %s9, %s7
  $region1: #{_fused_call.1} parent=0
    #allocation2 [shape = 'u8[4096]{0}', space=vmem, size = 0x1000, scoped, tag = 'input window, operand 0, single buffered']
    #allocation3 [shape = 's32[1]{0}', space=sflag, size = 0x4, scoped, tag = 'scoped memory for _fused_call.1']
    #allocation4 [shape = 's32[1]{0}', space=sflag, size = 0x4, scoped, tag = 'scoped memory for _fused_call.1']
    #allocation5 [shape = 'u8[32768]{0}', space=vmem, size = 0x8000, scoped, tag = 'input window, operand 1, single buffered']
    #allocation6 [shape = 's32[1]{0}', space=sflag, size = 0x4, scoped, tag = 'scoped memory for _fused_call.1']
    #allocation7 [shape = 'u8[32768]{0}', space=vmem, size = 0x8000, scoped, tag = 'input window, operand 3, single buffered']
    #allocation8 [shape = 'u8[32768]{0}', space=vmem, size = 0x8000, scoped, tag = 'input window, operand 5, single buffered']
    #allocation9 [shape = 's32[1]{0}', space=sflag, size = 0x4, scoped, tag = 'scoped memory for _fused_call.1']
    #allocation10 [shape = 'u8[4096]{0}', space=vmem, size = 0x1000, scoped, tag = 'output window, operand 0, single buffered']
    %11 = vsyncpa [#allocation3], 0
    %12 = vsyncpa [#allocation6], 0
    %13 = vsyncpa [#allocation9], 0
    %14 = vsyncpa [#allocation4], 0
    // Predicated region
    $region2: #{_fused_call.1} parent=1 // pred_check
      _
    $region3: #{_fused_call.1} parent=1 // pred_check_branch
      %16 = sbr.rel (0) target = $region5
    $region4: #{_fused_call.1} parent=1 // pred_region
      %s18 = ssub.s32 128, 128
      %19 = vsyncadd [#allocation3], %s18
      %s21 = sshll.u32 [#allocation2], 4
      %s22 = int_to_ptr.vmem [resolvable:$true] %s21
      %24 = dma.hbm_to_vmem [thread:$0]  %s0, 128, %s22, [#allocation3]
    $region5: #{_fused_call.1} parent=1 // pred_fallthru
      _
    // Predicated region
    $region6: #{_fused_call.1} parent=1 // pred_check
      _
    $region7: #{_fused_call.1} parent=1 // pred_check_branch
      %26 = sbr.rel (0) target = $region9
    $region8: #{_fused_call.1} parent=1 // pred_region
      %s28 = ssub.s32 1024, 1024
      %29 = vsyncadd [#allocation6], %s28
      %s30 = sshll.u32 [#allocation5], 4
      %s31 = int_to_ptr.vmem [resolvable:$true] %s30
      %36 = dma.hbm_to_vmem [thread:$0]  %s1, 1024, %s31, [#allocation6], 64, 64, 4
    $region9: #{_fused_call.1} parent=1 // pred_fallthru
      _
    // Predicated region
    $region10: #{_fused_call.1} parent=1 // pred_check
      _
    $region11: #{_fused_call.1} parent=1 // pred_check_branch
      %38 = sbr.rel (0) target = $region13
    $region12: #{_fused_call.1} parent=1 // pred_region
      _
    $region13: #{_fused_call.1} parent=1 // pred_fallthru
      _
    // Predicated region
    $region14: #{_fused_call.1} parent=1 // pred_check
      _
    $region15: #{_fused_call.1} parent=1 // pred_check_branch
      %40 = sbr.rel (0) target = $region17
    $region16: #{_fused_call.1} parent=1 // pred_region
      %s42 = ssub.s32 1024, 1024
      %43 = vsyncadd [#allocation6], %s42
      %s44 = sshll.u32 [#allocation7], 4
      %s45 = int_to_ptr.vmem [resolvable:$true] %s44
      %50 = dma.hbm_to_vmem [thread:$0]  %s3, 1024, %s45, [#allocation6], 64, 64, 4
    $region17: #{_fused_call.1} parent=1 // pred_fallthru
      _
    // Predicated region
    $region18: #{_fused_call.1} parent=1 // pred_check
      _
    $region19: #{_fused_call.1} parent=1 // pred_check_branch
      %52 = sbr.rel (0) target = $region21
    $region20: #{_fused_call.1} parent=1 // pred_region
      _
    $region21: #{_fused_call.1} parent=1 // pred_fallthru
      _
    // Predicated region
    $region22: #{_fused_call.1} parent=1 // pred_check
      _
    $region23: #{_fused_call.1} parent=1 // pred_check_branch
      %54 = sbr.rel (0) target = $region25
    $region24: #{_fused_call.1} parent=1 // pred_region
      %s56 = ssub.s32 1024, 1024
      %57 = vsyncadd [#allocation9], %s56
      %s58 = sshll.u32 [#allocation8], 4
      %s59 = int_to_ptr.vmem [resolvable:$true] %s58
      %64 = dma.hbm_to_vmem [thread:$0]  %s5, 1024, %s59, [#allocation9], 64, 64, 4
    $region25: #{_fused_call.1} parent=1 // pred_fallthru
      _
    // Predicated region
    $region26: #{_fused_call.1} parent=1 // pred_check
      _
    $region27: #{_fused_call.1} parent=1 // pred_check_branch
      %66 = sbr.rel (0) target = $region29
    $region28: #{_fused_call.1} parent=1 // pred_region
      %67 = dma.done [#allocation3], 128
    $region29: #{_fused_call.1} parent=1 // pred_fallthru
      _
    // Predicated region
    $region30: #{_fused_call.1} parent=1 // pred_check
      _
    $region31: #{_fused_call.1} parent=1 // pred_check_branch
      %69 = sbr.rel (0) target = $region33
    $region32: #{_fused_call.1} parent=1 // pred_region
      %70 = dma.done [#allocation6], 1024
    $region33: #{_fused_call.1} parent=1 // pred_fallthru
      _
    // Predicated region
    $region34: #{_fused_call.1} parent=1 // pred_check
      _
    $region35: #{_fused_call.1} parent=1 // pred_check_branch
      %72 = sbr.rel (0) target = $region37
    $region36: #{_fused_call.1} parent=1 // pred_region
      %73 = dma.done [#allocation6], 1024
    $region37: #{_fused_call.1} parent=1 // pred_fallthru
      _
    // Predicated region
    $region38: #{_fused_call.1} parent=1 // pred_check
      _
    $region39: #{_fused_call.1} parent=1 // pred_check_branch
      %75 = sbr.rel (0) target = $region41
    $region40: #{_fused_call.1} parent=1 // pred_region
      %76 = dma.done [#allocation9], 1024
    $region41: #{_fused_call.1} parent=1 // pred_fallthru
      _
    %v78 = vld [vmem:[#allocation2] sm:$0xff]
    %v79 = vpack.c.bf16 %v78, %v78
    %v80 = vld [vmem:[#allocation5] sm:$0xf]
    %v81 = vld [vmem:[#allocation5 + $0x4] sm:$0xf]
    %v82 = vld [vmem:[#allocation5 + $0x8] sm:$0xf]
    %v83 = vld [vmem:[#allocation5 + $0xc] sm:$0xf]
    %v84 = vld [vmem:[#allocation5 + $0x10] sm:$0xf]
    %v85 = vld [vmem:[#allocation5 + $0x14] sm:$0xf]
    %v86 = vld [vmem:[#allocation5 + $0x18] sm:$0xf]
    %v87 = vld [vmem:[#allocation5 + $0x1c] sm:$0xf]
    %v88 = vld [vmem:[#allocation5 + $0x20] sm:$0xf]
    %v89 = vld [vmem:[#allocation5 + $0x24] sm:$0xf]
    %v90 = vld [vmem:[#allocation5 + $0x28] sm:$0xf]
    %v91 = vld [vmem:[#allocation5 + $0x2c] sm:$0xf]
    %v92 = vld [vmem:[#allocation5 + $0x30] sm:$0xf]
    %v93 = vld [vmem:[#allocation5 + $0x34] sm:$0xf]
    %v94 = vld [vmem:[#allocation5 + $0x38] sm:$0xf]
    %v95 = vld [vmem:[#allocation5 + $0x3c] sm:$0xf]
    %v96 = vld [vmem:[%s2] sm:$0x1]
    %v98 = vlaneseq
    %v99 = vshrl.u32 %v98, 7
    %v100 = vsub.s32 0, %v99
    %v101 = vrot.slane %v96, %v100
    %v119 = vunpack.c.l.b16 %v80
    %v120 = vunpack.c.l.b16 %v81
    %v121 = vunpack.c.l.b16 %v82
    %v122 = vunpack.c.l.b16 %v83
    %v123 = vunpack.c.l.b16 %v84
    %v124 = vunpack.c.l.b16 %v85
    %v125 = vunpack.c.l.b16 %v86
    %v126 = vunpack.c.l.b16 %v87
    %v127 = vunpack.c.l.b16 %v88
    %v128 = vunpack.c.l.b16 %v89
    %v129 = vunpack.c.l.b16 %v90
    %v130 = vunpack.c.l.b16 %v91
    %v131 = vunpack.c.l.b16 %v92
    %v132 = vunpack.c.l.b16 %v93
    %v133 = vunpack.c.l.b16 %v94
    %v134 = vunpack.c.l.b16 %v95
    %v135 = vpack.c.b16 %v120, %v119
    %v136 = vpack.c.b16 %v122, %v121
    %v137 = vpack.c.b16 %v124, %v123
    %v138 = vpack.c.b16 %v126, %v125
    %v139 = vpack.c.b16 %v128, %v127
    %v140 = vpack.c.b16 %v130, %v129
    %v141 = vpack.c.b16 %v132, %v131
    %v142 = vpack.c.b16 %v134, %v133
    %151 = vmatprep.subr.bf16.mxu0 0
    %152 = vmatpush1.bf16.msra.mxu0 %v142
    %153 = vmatprep.subr.bf16.mxu0 0
    %154 = vmatpush1.bf16.msra.mxu0 %v141
    %155 = vmatprep.subr.bf16.mxu0 0
    %156 = vmatpush1.bf16.msra.mxu0 %v140
    %157 = vmatprep.subr.bf16.mxu0 0
    %158 = vmatpush1.bf16.msra.mxu0 %v139
    %159 = vmatprep.subr.bf16.mxu0 0
    %160 = vmatpush1.bf16.msra.mxu0 %v138
    %161 = vmatprep.subr.bf16.mxu0 0
    %162 = vmatpush1.bf16.msra.mxu0 %v137
    %163 = vmatprep.subr.bf16.mxu0 0
    %164 = vmatpush1.bf16.msra.mxu0 %v136
    %165 = vmatprep.subr.bf16.mxu0 0
    %166 = vmatpush1.bf16.msra.mxu0 %v135
    %167 = vmatprep.subr.bf16.mxu0 0
    %168 = vmatpush2.bf16.msra.mxu0 0
    %169 = vmatprep.subr.bf16.mxu0 0
    %170 = vmatpush2.bf16.msra.mxu0 0
    %171 = vmatprep.subr.bf16.mxu0 0
    %172 = vmatpush2.bf16.msra.mxu0 0
    %173 = vmatprep.subr.bf16.mxu0 0
    %174 = vmatpush2.bf16.msra.mxu0 0
    %175 = vmatprep.subr.bf16.mxu0 0
    %176 = vmatpush2.bf16.msra.mxu0 0
    %177 = vmatprep.subr.bf16.mxu0 0
    %178 = vmatpush2.bf16.msra.mxu0 0
    %179 = vmatprep.subr.bf16.mxu0 0
    %180 = vmatpush2.bf16.msra.mxu0 0
    %181 = vmatprep.subr.bf16.mxu0 0
    %182 = vmatpush2.bf16.msra.mxu0 0
    %183 = vmatprep.mubr.bf16.mxu0 0
    %184 = vmatmul.mubr.bf16.gmra.mxu0 %v79
    %v185 = vpop.f32.mrf.mxu0
    %v186 = vadd.f32 %v101, %v185
    %v187 = vpop.f32.mrf.mxu0
    %v188 = vpop.f32.mrf.mxu0
    %v189 = vpop.f32.mrf.mxu0
    %190 = vdwg.mxu0
    %v191 = vmax.f32 %v186, 0.0
    %v192 = vpack.c.bf16 %v191, %v191
    %v193 = vld [vmem:[#allocation7] sm:$0xf]
    %v194 = vld [vmem:[#allocation7 + $0x4] sm:$0xf]
    %v195 = vld [vmem:[#allocation7 + $0x8] sm:$0xf]
    %v196 = vld [vmem:[#allocation7 + $0xc] sm:$0xf]
    %v197 = vld [vmem:[#allocation7 + $0x10] sm:$0xf]
    %v198 = vld [vmem:[#allocation7 + $0x14] sm:$0xf]
    %v199 = vld [vmem:[#allocation7 + $0x18] sm:$0xf]
    %v200 = vld [vmem:[#allocation7 + $0x1c] sm:$0xf]
    %v201 = vld [vmem:[#allocation7 + $0x20] sm:$0xf]
    %v202 = vld [vmem:[#allocation7 + $0x24] sm:$0xf]
    %v203 = vld [vmem:[#allocation7 + $0x28] sm:$0xf]
    %v204 = vld [vmem:[#allocation7 + $0x2c] sm:$0xf]
    %v205 = vld [vmem:[#allocation7 + $0x30] sm:$0xf]
    %v206 = vld [vmem:[#allocation7 + $0x34] sm:$0xf]
    %v207 = vld [vmem:[#allocation7 + $0x38] sm:$0xf]
    %v208 = vld [vmem:[#allocation7 + $0x3c] sm:$0xf]
    %v209 = vld [vmem:[%s4] sm:$0x1]
    %v211 = vlaneseq
    %v212 = vshrl.u32 %v211, 7
    %v213 = vsub.s32 0, %v212
    %v214 = vrot.slane %v209, %v213
    %v232 = vunpack.c.l.b16 %v193
    %v233 = vunpack.c.l.b16 %v194
    %v234 = vunpack.c.l.b16 %v195
    %v235 = vunpack.c.l.b16 %v196
    %v236 = vunpack.c.l.b16 %v197
    %v237 = vunpack.c.l.b16 %v198
    %v238 = vunpack.c.l.b16 %v199
    %v239 = vunpack.c.l.b16 %v200
    %v240 = vunpack.c.l.b16 %v201
    %v241 = vunpack.c.l.b16 %v202
    %v242 = vunpack.c.l.b16 %v203
    %v243 = vunpack.c.l.b16 %v204
    %v244 = vunpack.c.l.b16 %v205
    %v245 = vunpack.c.l.b16 %v206
    %v246 = vunpack.c.l.b16 %v207
    %v247 = vunpack.c.l.b16 %v208
    %v248 = vpack.c.b16 %v233, %v232
    %v249 = vpack.c.b16 %v235, %v234
    %v250 = vpack.c.b16 %v237, %v236
    %v251 = vpack.c.b16 %v239, %v238
    %v252 = vpack.c.b16 %v241, %v240
    %v253 = vpack.c.b16 %v243, %v242
    %v254 = vpack.c.b16 %v245, %v244
    %v255 = vpack.c.b16 %v247, %v246
    %264 = vmatprep.subr.bf16.mxu0 0
    %265 = vmatpush1.bf16.msra.mxu0 %v255
    %266 = vmatprep.subr.bf16.mxu0 0
    %267 = vmatpush1.bf16.msra.mxu0 %v254
    %268 = vmatprep.subr.bf16.mxu0 0
    %269 = vmatpush1.bf16.msra.mxu0 %v253
    %270 = vmatprep.subr.bf16.mxu0 0
    %271 = vmatpush1.bf16.msra.mxu0 %v252
    %272 = vmatprep.subr.bf16.mxu0 0
    %273 = vmatpush1.bf16.msra.mxu0 %v251
    %274 = vmatprep.subr.bf16.mxu0 0
    %275 = vmatpush1.bf16.msra.mxu0 %v250
    %276 = vmatprep.subr.bf16.mxu0 0
    %277 = vmatpush1.bf16.msra.mxu0 %v249
    %278 = vmatprep.subr.bf16.mxu0 0
    %279 = vmatpush1.bf16.msra.mxu0 %v248
    %280 = vmatprep.subr.bf16.mxu0 0
    %281 = vmatpush2.bf16.msra.mxu0 0
    %282 = vmatprep.subr.bf16.mxu0 0
    %283 = vmatpush2.bf16.msra.mxu0 0
    %284 = vmatprep.subr.bf16.mxu0 0
    %285 = vmatpush2.bf16.msra.mxu0 0
    %286 = vmatprep.subr.bf16.mxu0 0
    %287 = vmatpush2.bf16.msra.mxu0 0
    %288 = vmatprep.subr.bf16.mxu0 0
    %289 = vmatpush2.bf16.msra.mxu0 0
    %290 = vmatprep.subr.bf16.mxu0 0
    %291 = vmatpush2.bf16.msra.mxu0 0
    %292 = vmatprep.subr.bf16.mxu0 0
    %293 = vmatpush2.bf16.msra.mxu0 0
    %294 = vmatprep.subr.bf16.mxu0 0
    %295 = vmatpush2.bf16.msra.mxu0 0
    %296 = vmatprep.mubr.bf16.mxu0 0
    %297 = vmatmul.mubr.bf16.gmra.mxu0 %v192
    %v298 = vpop.f32.mrf.mxu0
    %v299 = vadd.f32 %v214, %v298
    %v300 = vpop.f32.mrf.mxu0
    %v301 = vpop.f32.mrf.mxu0
    %v302 = vpop.f32.mrf.mxu0
    %303 = vdwg.mxu0
    %v304 = vmax.f32 %v299, 0.0
    %v305 = vpack.c.bf16 %v304, %v304
    %v306 = vld [vmem:[#allocation8] sm:$0xf]
    %v307 = vld [vmem:[#allocation8 + $0x4] sm:$0xf]
    %v308 = vld [vmem:[#allocation8 + $0x8] sm:$0xf]
    %v309 = vld [vmem:[#allocation8 + $0xc] sm:$0xf]
    %v310 = vld [vmem:[#allocation8 + $0x10] sm:$0xf]
    %v311 = vld [vmem:[#allocation8 + $0x14] sm:$0xf]
    %v312 = vld [vmem:[#allocation8 + $0x18] sm:$0xf]
    %v313 = vld [vmem:[#allocation8 + $0x1c] sm:$0xf]
    %v314 = vld [vmem:[#allocation8 + $0x20] sm:$0xf]
    %v315 = vld [vmem:[#allocation8 + $0x24] sm:$0xf]
    %v316 = vld [vmem:[#allocation8 + $0x28] sm:$0xf]
    %v317 = vld [vmem:[#allocation8 + $0x2c] sm:$0xf]
    %v318 = vld [vmem:[#allocation8 + $0x30] sm:$0xf]
    %v319 = vld [vmem:[#allocation8 + $0x34] sm:$0xf]
    %v320 = vld [vmem:[#allocation8 + $0x38] sm:$0xf]
    %v321 = vld [vmem:[#allocation8 + $0x3c] sm:$0xf]
    %v338 = vunpack.c.l.b16 %v306
    %v339 = vunpack.c.l.b16 %v307
    %v340 = vunpack.c.l.b16 %v308
    %v341 = vunpack.c.l.b16 %v309
    %v342 = vunpack.c.l.b16 %v310
    %v343 = vunpack.c.l.b16 %v311
    %v344 = vunpack.c.l.b16 %v312
    %v345 = vunpack.c.l.b16 %v313
    %v346 = vunpack.c.l.b16 %v314
    %v347 = vunpack.c.l.b16 %v315
    %v348 = vunpack.c.l.b16 %v316
    %v349 = vunpack.c.l.b16 %v317
    %v350 = vunpack.c.l.b16 %v318
    %v351 = vunpack.c.l.b16 %v319
    %v352 = vunpack.c.l.b16 %v320
    %v353 = vunpack.c.l.b16 %v321
    %v354 = vpack.c.b16 %v339, %v338
    %v355 = vpack.c.b16 %v341, %v340
    %v356 = vpack.c.b16 %v343, %v342
    %v357 = vpack.c.b16 %v345, %v344
    %v358 = vpack.c.b16 %v347, %v346
    %v359 = vpack.c.b16 %v349, %v348
    %v360 = vpack.c.b16 %v351, %v350
    %v361 = vpack.c.b16 %v353, %v352
    %370 = vmatprep.subr.bf16.mxu0 0
    %371 = vmatpush1.bf16.msra.mxu0 %v361
    %372 = vmatprep.subr.bf16.mxu0 0
    %373 = vmatpush1.bf16.msra.mxu0 %v360
    %374 = vmatprep.subr.bf16.mxu0 0
    %375 = vmatpush1.bf16.msra.mxu0 %v359
    %376 = vmatprep.subr.bf16.mxu0 0
    %377 = vmatpush1.bf16.msra.mxu0 %v358
    %378 = vmatprep.subr.bf16.mxu0 0
    %379 = vmatpush1.bf16.msra.mxu0 %v357
    %380 = vmatprep.subr.bf16.mxu0 0
    %381 = vmatpush1.bf16.msra.mxu0 %v356
    %382 = vmatprep.subr.bf16.mxu0 0
    %383 = vmatpush1.bf16.msra.mxu0 %v355
    %384 = vmatprep.subr.bf16.mxu0 0
    %385 = vmatpush1.bf16.msra.mxu0 %v354
    %386 = vmatprep.subr.bf16.mxu0 0
    %387 = vmatpush2.bf16.msra.mxu0 0
    %388 = vmatprep.subr.bf16.mxu0 0
    %389 = vmatpush2.bf16.msra.mxu0 0
    %390 = vmatprep.subr.bf16.mxu0 0
    %391 = vmatpush2.bf16.msra.mxu0 0
    %392 = vmatprep.subr.bf16.mxu0 0
    %393 = vmatpush2.bf16.msra.mxu0 0
    %394 = vmatprep.subr.bf16.mxu0 0
    %395 = vmatpush2.bf16.msra.mxu0 0
    %396 = vmatprep.subr.bf16.mxu0 0
    %397 = vmatpush2.bf16.msra.mxu0 0
    %398 = vmatprep.subr.bf16.mxu0 0
    %399 = vmatpush2.bf16.msra.mxu0 0
    %400 = vmatprep.subr.bf16.mxu0 0
    %401 = vmatpush2.bf16.msra.mxu0 0
    %402 = vmatprep.mubr.bf16.mxu0 0
    %403 = vmatmul.mubr.bf16.gmra.mxu0 %v305
    %v404 = vpop.f32.mrf.mxu0
    %v405 = vadd.f32 0.0, %v404
    %v406 = vpop.f32.mrf.mxu0
    %v407 = vpop.f32.mrf.mxu0
    %v408 = vpop.f32.mrf.mxu0
    %409 = vdwg.mxu0
    %410 = vst [vmem:[#allocation10] sm:$0xff] %v405
    // Predicated region
    $region42: #{_fused_call.1} parent=1 // pred_check
      _
    $region43: #{_fused_call.1} parent=1 // pred_check_branch
      %412 = sbr.rel (0) target = $region45
    $region44: #{_fused_call.1} parent=1 // pred_region
      %s414 = ssub.s32 128, 128
      %415 = vsyncadd [#allocation4], %s414
      %s417 = sshll.u32 [#allocation10], 4
      %s418 = int_to_ptr.vmem [resolvable:$true] %s417
      %420 = dma.vmem_to_hbm [thread:$0]  %s418, 128, %s6, [#allocation4]
    $region45: #{_fused_call.1} parent=1 // pred_fallthru
      _
    // Predicated region
    $region46: #{_fused_call.1} parent=1 // pred_check
      _
    $region47: #{_fused_call.1} parent=1 // pred_check_branch
      %422 = sbr.rel (0) target = $region49
    $region48: #{_fused_call.1} parent=1 // pred_region
      %423 = dma.done [#allocation4], 128
    $region49: #{_fused_call.1} parent=1 // pred_fallthru
      _
    %424 = vsyncpa [#allocation3], 1
    %425 = vsyncpa [#allocation6], 1
    %426 = vsyncpa [#allocation9], 1
    %427 = vsyncpa [#allocation4], 1

// kernel: _fused_call.1
$region0: #{_fused_call.1}
  #allocation0 [shape = 'u32[]', space=smem, size = 0x4, offset = 0x4, fixed_abs, tag = 'smem constant byte address 0x4 - core index']
  #allocation1 [shape = 'u32[144,128]{1,0:T(1,128)}', space=vmem, size = 0x12000, scoped, tag = 'internal scratch']
  %s0 = inlined_call_operand.hbm [shape: f32[8,128], index: 0, kind: input, shape index: {}]
  %s1 = inlined_call_operand.hbm [shape: bf16[128,128], index: 1, kind: input, shape index: {}]
  %s2 = inlined_call_operand.vmem [shape: f32[1,128], index: 2, kind: input, shape index: {}]
  %s3 = inlined_call_operand.hbm [shape: bf16[128,128], index: 3, kind: input, shape index: {}]
  %s4 = inlined_call_operand.vmem [shape: f32[1,128], index: 4, kind: input, shape index: {}]
  %s5 = inlined_call_operand.hbm [shape: bf16[128,128], index: 5, kind: input, shape index: {}]
  %s6 = inlined_call_operand.hbm [shape: f32[8,128], index: 6, kind: output, shape index: {}]
  %s7 = sld [smem:[#allocation0]]
  $region50: #{_fused_call.1} parent=0
    _
  %s9 = ssub.s32 1, %s7
  %s10 = scalar_select 0, %s9, %s7
  $region1: #{_fused_call.1} parent=0
    #allocation2 [shape = 'u8[4096]{0}', space=vmem, size = 0x1000, scoped, tag = 'input window, operand 0, single buffered']
    #allocation3 [shape = 's32[1]{0}', space=sflag, size = 0x4, scoped, tag = 'scoped memory for _fused_call.1']
    #allocation4 [shape = 's32[1]{0}', space=sflag, size = 0x4, scoped, tag = 'scoped memory for _fused_call.1']
    #allocation5 [shape = 'u8[32768]{0}', space=vmem, size = 0x8000, scoped, tag = 'input window, operand 1, single buffered']
    #allocation6 [shape = 's32[1]{0}', space=sflag, size = 0x4, scoped, tag = 'scoped memory for _fused_call.1']
    #allocation7 [shape = 'u8[32768]{0}', space=vmem, size = 0x8000, scoped, tag = 'input window, operand 3, single buffered']
    #allocation8 [shape = 'u8[32768]{0}', space=vmem, size = 0x8000, scoped, tag = 'input window, operand 5, single buffered']
    #allocation9 [shape = 's32[1]{0}', space=sflag, size = 0x4, scoped, tag = 'scoped memory for _fused_call.1']
    #allocation10 [shape = 'u8[4096]{0}', space=vmem, size = 0x1000, scoped, tag = 'output window, operand 0, single buffered']
    %11 = vsyncpa [#allocation3], 0
    %12 = vsyncpa [#allocation6], 0
    %13 = vsyncpa [#allocation9], 0
    %14 = vsyncpa [#allocation4], 0
    // Predicated region
    $region2: #{_fused_call.1} parent=1 // pred_check
      _
    $region3: #{_fused_call.1} parent=1 // pred_check_branch
      %16 = sbr.rel (0) target = $region5
    $region4: #{_fused_call.1} parent=1 // pred_region
      %s18 = ssub.s32 128, 128
      %19 = vsyncadd [#allocation3], %s18
      %s21 = sshll.u32 [#allocation2], 4
      %s22 = int_to_ptr.vmem [resolvable:$true] %s21
      %24 = dma.hbm_to_vmem [thread:$0]  %s0, 128, %s22, [#allocation3]
    $region5: #{_fused_call.1} parent=1 // pred_fallthru
      _
    // Predicated region
    $region6: #{_fused_call.1} parent=1 // pred_check
      _
    $region7: #{_fused_call.1} parent=1 // pred_check_branch
      %26 = sbr.rel (0) target = $region9
    $region8: #{_fused_call.1} parent=1 // pred_region
      %s28 = ssub.s32 1024, 1024
      %29 = vsyncadd [#allocation6], %s28
      %s30 = sshll.u32 [#allocation5], 4
      %s31 = int_to_ptr.vmem [resolvable:$true] %s30
      %36 = dma.hbm_to_vmem [thread:$0]  %s1, 1024, %s31, [#allocation6], 64, 64, 4
    $region9: #{_fused_call.1} parent=1 // pred_fallthru
      _
    // Predicated region
    $region10: #{_fused_call.1} parent=1 // pred_check
      _
    $region11: #{_fused_call.1} parent=1 // pred_check_branch
      %38 = sbr.rel (0) target = $region13
    $region12: #{_fused_call.1} parent=1 // pred_region
      _
    $region13: #{_fused_call.1} parent=1 // pred_fallthru
      _
    // Predicated region
    $region14: #{_fused_call.1} parent=1 // pred_check
      _
    $region15: #{_fused_call.1} parent=1 // pred_check_branch
      %40 = sbr.rel (0) target = $region17
    $region16: #{_fused_call.1} parent=1 // pred_region
      %s42 = ssub.s32 1024, 1024
      %43 = vsyncadd [#allocation6], %s42
      %s44 = sshll.u32 [#allocation7], 4
      %s45 = int_to_ptr.vmem [resolvable:$true] %s44
      %50 = dma.hbm_to_vmem [thread:$0]  %s3, 1024, %s45, [#allocation6], 64, 64, 4
    $region17: #{_fused_call.1} parent=1 // pred_fallthru
      _
    // Predicated region
    $region18: #{_fused_call.1} parent=1 // pred_check
      _
    $region19: #{_fused_call.1} parent=1 // pred_check_branch
      %52 = sbr.rel (0) target = $region21
    $region20: #{_fused_call.1} parent=1 // pred_region
      _
    $region21: #{_fused_call.1} parent=1 // pred_fallthru
      _
    // Predicated region
    $region22: #{_fused_call.1} parent=1 // pred_check
      _
    $region23: #{_fused_call.1} parent=1 // pred_check_branch
      %54 = sbr.rel (0) target = $region25
    $region24: #{_fused_call.1} parent=1 // pred_region
      %s56 = ssub.s32 1024, 1024
      %57 = vsyncadd [#allocation9], %s56
      %s58 = sshll.u32 [#allocation8], 4
      %s59 = int_to_ptr.vmem [resolvable:$true] %s58
      %64 = dma.hbm_to_vmem [thread:$0]  %s5, 1024, %s59, [#allocation9], 64, 64, 4
    $region25: #{_fused_call.1} parent=1 // pred_fallthru
      _
    // Predicated region
    $region26: #{_fused_call.1} parent=1 // pred_check
      _
    $region27: #{_fused_call.1} parent=1 // pred_check_branch
      %66 = sbr.rel (0) target = $region29
    $region28: #{_fused_call.1} parent=1 // pred_region
      %67 = dma.done [#allocation3], 128
    $region29: #{_fused_call.1} parent=1 // pred_fallthru
      _
    // Predicated region
    $region30: #{_fused_call.1} parent=1 // pred_check
      _
    $region31: #{_fused_call.1} parent=1 // pred_check_branch
      %69 = sbr.rel (0) target = $region33
    $region32: #{_fused_call.1} parent=1 // pred_region
      %70 = dma.done [#allocation6], 1024
    $region33: #{_fused_call.1} parent=1 // pred_fallthru
      _
    // Predicated region
    $region34: #{_fused_call.1} parent=1 // pred_check
      _
    $region35: #{_fused_call.1} parent=1 // pred_check_branch
      %72 = sbr.rel (0) target = $region37
    $region36: #{_fused_call.1} parent=1 // pred_region
      %73 = dma.done [#allocation6], 1024
    $region37: #{_fused_call.1} parent=1 // pred_fallthru
      _
    // Predicated region
    $region38: #{_fused_call.1} parent=1 // pred_check
      _
    $region39: #{_fused_call.1} parent=1 // pred_check_branch
      %75 = sbr.rel (0) target = $region41
    $region40: #{_fused_call.1} parent=1 // pred_region
      %76 = dma.done [#allocation9], 1024
    $region41: #{_fused_call.1} parent=1 // pred_fallthru
      _
    %v78 = vld [vmem:[#allocation2] sm:$0xff]
    %v79 = vpack.c.bf16 %v78, %v78
    %v80 = vld [vmem:[#allocation5] sm:$0xf]
    %v81 = vld [vmem:[#allocation5 + $0x4] sm:$0xf]
    %v82 = vld [vmem:[#allocation5 + $0x8] sm:$0xf]
    %v83 = vld [vmem:[#allocation5 + $0xc] sm:$0xf]
    %v84 = vld [vmem:[#allocation5 + $0x10] sm:$0xf]
    %v85 = vld [vmem:[#allocation5 + $0x14] sm:$0xf]
    %v86 = vld [vmem:[#allocation5 + $0x18] sm:$0xf]
    %v87 = vld [vmem:[#allocation5 + $0x1c] sm:$0xf]
    %v88 = vld [vmem:[#allocation5 + $0x20] sm:$0xf]
    %v89 = vld [vmem:[#allocation5 + $0x24] sm:$0xf]
    %v90 = vld [vmem:[#allocation5 + $0x28] sm:$0xf]
    %v91 = vld [vmem:[#allocation5 + $0x2c] sm:$0xf]
    %v92 = vld [vmem:[#allocation5 + $0x30] sm:$0xf]
    %v93 = vld [vmem:[#allocation5 + $0x34] sm:$0xf]
    %v94 = vld [vmem:[#allocation5 + $0x38] sm:$0xf]
    %v95 = vld [vmem:[#allocation5 + $0x3c] sm:$0xf]
    %v96 = vld [vmem:[%s2] sm:$0x1]
    %v98 = vlaneseq
    %v99 = vshrl.u32 %v98, 7
    %v100 = vsub.s32 0, %v99
    %v101 = vrot.slane %v96, %v100
    %v119 = vunpack.c.l.b16 %v80
    %v120 = vunpack.c.l.b16 %v81
    %v121 = vunpack.c.l.b16 %v82
    %v122 = vunpack.c.l.b16 %v83
    %v123 = vunpack.c.l.b16 %v84
    %v124 = vunpack.c.l.b16 %v85
    %v125 = vunpack.c.l.b16 %v86
    %v126 = vunpack.c.l.b16 %v87
    %v127 = vunpack.c.l.b16 %v88
    %v128 = vunpack.c.l.b16 %v89
    %v129 = vunpack.c.l.b16 %v90
    %v130 = vunpack.c.l.b16 %v91
    %v131 = vunpack.c.l.b16 %v92
    %v132 = vunpack.c.l.b16 %v93
    %v133 = vunpack.c.l.b16 %v94
    %v134 = vunpack.c.l.b16 %v95
    %v135 = vpack.c.b16 %v120, %v119
    %v136 = vpack.c.b16 %v122, %v121
    %v137 = vpack.c.b16 %v124, %v123
    %v138 = vpack.c.b16 %v126, %v125
    %v139 = vpack.c.b16 %v128, %v127
    %v140 = vpack.c.b16 %v130, %v129
    %v141 = vpack.c.b16 %v132, %v131
    %v142 = vpack.c.b16 %v134, %v133
    %151 = vmatprep.subr.bf16.mxu0 0
    %152 = vmatpush1.bf16.msra.mxu0 %v142
    %153 = vmatprep.subr.bf16.mxu0 0
    %154 = vmatpush1.bf16.msra.mxu0 %v141
    %155 = vmatprep.subr.bf16.mxu0 0
    %156 = vmatpush1.bf16.msra.mxu0 %v140
    %157 = vmatprep.subr.bf16.mxu0 0
    %158 = vmatpush1.bf16.msra.mxu0 %v139
    %159 = vmatprep.subr.bf16.mxu0 0
    %160 = vmatpush1.bf16.msra.mxu0 %v138
    %161 = vmatprep.subr.bf16.mxu0 0
    %162 = vmatpush1.bf16.msra.mxu0 %v137
    %163 = vmatprep.subr.bf16.mxu0 0
    %164 = vmatpush1.bf16.msra.mxu0 %v136
    %165 = vmatprep.subr.bf16.mxu0 0
    %166 = vmatpush1.bf16.msra.mxu0 %v135
    %167 = vmatprep.subr.bf16.mxu0 0
    %168 = vmatpush2.bf16.msra.mxu0 0
    %169 = vmatprep.subr.bf16.mxu0 0
    %170 = vmatpush2.bf16.msra.mxu0 0
    %171 = vmatprep.subr.bf16.mxu0 0
    %172 = vmatpush2.bf16.msra.mxu0 0
    %173 = vmatprep.subr.bf16.mxu0 0
    %174 = vmatpush2.bf16.msra.mxu0 0
    %175 = vmatprep.subr.bf16.mxu0 0
    %176 = vmatpush2.bf16.msra.mxu0 0
    %177 = vmatprep.subr.bf16.mxu0 0
    %178 = vmatpush2.bf16.msra.mxu0 0
    %179 = vmatprep.subr.bf16.mxu0 0
    %180 = vmatpush2.bf16.msra.mxu0 0
    %181 = vmatprep.subr.bf16.mxu0 0
    %182 = vmatpush2.bf16.msra.mxu0 0
    %183 = vmatprep.mubr.bf16.mxu0 0
    %184 = vmatmul.mubr.bf16.gmra.mxu0 %v79
    %v185 = vpop.f32.mrf.mxu0
    %v186 = vadd.f32 %v101, %v185
    %v187 = vpop.f32.mrf.mxu0
    %v188 = vpop.f32.mrf.mxu0
    %v189 = vpop.f32.mrf.mxu0
    %190 = vdwg.mxu0
    %v191 = vmax.f32 %v186, 0.0
    %v192 = vpack.c.bf16 %v191, %v191
    %v193 = vld [vmem:[#allocation7] sm:$0xf]
    %v194 = vld [vmem:[#allocation7 + $0x4] sm:$0xf]
    %v195 = vld [vmem:[#allocation7 + $0x8] sm:$0xf]
    %v196 = vld [vmem:[#allocation7 + $0xc] sm:$0xf]
    %v197 = vld [vmem:[#allocation7 + $0x10] sm:$0xf]
    %v198 = vld [vmem:[#allocation7 + $0x14] sm:$0xf]
    %v199 = vld [vmem:[#allocation7 + $0x18] sm:$0xf]
    %v200 = vld [vmem:[#allocation7 + $0x1c] sm:$0xf]
    %v201 = vld [vmem:[#allocation7 + $0x20] sm:$0xf]
    %v202 = vld [vmem:[#allocation7 + $0x24] sm:$0xf]
    %v203 = vld [vmem:[#allocation7 + $0x28] sm:$0xf]
    %v204 = vld [vmem:[#allocation7 + $0x2c] sm:$0xf]
    %v205 = vld [vmem:[#allocation7 + $0x30] sm:$0xf]
    %v206 = vld [vmem:[#allocation7 + $0x34] sm:$0xf]
    %v207 = vld [vmem:[#allocation7 + $0x38] sm:$0xf]
    %v208 = vld [vmem:[#allocation7 + $0x3c] sm:$0xf]
    %v209 = vld [vmem:[%s4] sm:$0x1]
    %v211 = vlaneseq
    %v212 = vshrl.u32 %v211, 7
    %v213 = vsub.s32 0, %v212
    %v214 = vrot.slane %v209, %v213
    %v232 = vunpack.c.l.b16 %v193
    %v233 = vunpack.c.l.b16 %v194
    %v234 = vunpack.c.l.b16 %v195
    %v235 = vunpack.c.l.b16 %v196
    %v236 = vunpack.c.l.b16 %v197
    %v237 = vunpack.c.l.b16 %v198
    %v238 = vunpack.c.l.b16 %v199
    %v239 = vunpack.c.l.b16 %v200
    %v240 = vunpack.c.l.b16 %v201
    %v241 = vunpack.c.l.b16 %v202
    %v242 = vunpack.c.l.b16 %v203
    %v243 = vunpack.c.l.b16 %v204
    %v244 = vunpack.c.l.b16 %v205
    %v245 = vunpack.c.l.b16 %v206
    %v246 = vunpack.c.l.b16 %v207
    %v247 = vunpack.c.l.b16 %v208
    %v248 = vpack.c.b16 %v233, %v232
    %v249 = vpack.c.b16 %v235, %v234
    %v250 = vpack.c.b16 %v237, %v236
    %v251 = vpack.c.b16 %v239, %v238
    %v252 = vpack.c.b16 %v241, %v240
    %v253 = vpack.c.b16 %v243, %v242
    %v254 = vpack.c.b16 %v245, %v244
    %v255 = vpack.c.b16 %v247, %v246
    %264 = vmatprep.subr.bf16.mxu0 0
    %265 = vmatpush1.bf16.msra.mxu0 %v255
    %266 = vmatprep.subr.bf16.mxu0 0
    %267 = vmatpush1.bf16.msra.mxu0 %v254
    %268 = vmatprep.subr.bf16.mxu0 0
    %269 = vmatpush1.bf16.msra.mxu0 %v253
    %270 = vmatprep.subr.bf16.mxu0 0
    %271 = vmatpush1.bf16.msra.mxu0 %v252
    %272 = vmatprep.subr.bf16.mxu0 0
    %273 = vmatpush1.bf16.msra.mxu0 %v251
    %274 = vmatprep.subr.bf16.mxu0 0
    %275 = vmatpush1.bf16.msra.mxu0 %v250
    %276 = vmatprep.subr.bf16.mxu0 0
    %277 = vmatpush1.bf16.msra.mxu0 %v249
    %278 = vmatprep.subr.bf16.mxu0 0
    %279 = vmatpush1.bf16.msra.mxu0 %v248
    %280 = vmatprep.subr.bf16.mxu0 0
    %281 = vmatpush2.bf16.msra.mxu0 0
    %282 = vmatprep.subr.bf16.mxu0 0
    %283 = vmatpush2.bf16.msra.mxu0 0
    %284 = vmatprep.subr.bf16.mxu0 0
    %285 = vmatpush2.bf16.msra.mxu0 0
    %286 = vmatprep.subr.bf16.mxu0 0
    %287 = vmatpush2.bf16.msra.mxu0 0
    %288 = vmatprep.subr.bf16.mxu0 0
    %289 = vmatpush2.bf16.msra.mxu0 0
    %290 = vmatprep.subr.bf16.mxu0 0
    %291 = vmatpush2.bf16.msra.mxu0 0
    %292 = vmatprep.subr.bf16.mxu0 0
    %293 = vmatpush2.bf16.msra.mxu0 0
    %294 = vmatprep.subr.bf16.mxu0 0
    %295 = vmatpush2.bf16.msra.mxu0 0
    %296 = vmatprep.mubr.bf16.mxu0 0
    %297 = vmatmul.mubr.bf16.gmra.mxu0 %v192
    %v298 = vpop.f32.mrf.mxu0
    %v299 = vadd.f32 %v214, %v298
    %v300 = vpop.f32.mrf.mxu0
    %v301 = vpop.f32.mrf.mxu0
    %v302 = vpop.f32.mrf.mxu0
    %303 = vdwg.mxu0
    %v304 = vmax.f32 %v299, 0.0
    %v305 = vpack.c.bf16 %v304, %v304
    %v306 = vld [vmem:[#allocation8] sm:$0xf]
    %v307 = vld [vmem:[#allocation8 + $0x4] sm:$0xf]
    %v308 = vld [vmem:[#allocation8 + $0x8] sm:$0xf]
    %v309 = vld [vmem:[#allocation8 + $0xc] sm:$0xf]
    %v310 = vld [vmem:[#allocation8 + $0x10] sm:$0xf]
    %v311 = vld [vmem:[#allocation8 + $0x14] sm:$0xf]
    %v312 = vld [vmem:[#allocation8 + $0x18] sm:$0xf]
    %v313 = vld [vmem:[#allocation8 + $0x1c] sm:$0xf]
    %v314 = vld [vmem:[#allocation8 + $0x20] sm:$0xf]
    %v315 = vld [vmem:[#allocation8 + $0x24] sm:$0xf]
    %v316 = vld [vmem:[#allocation8 + $0x28] sm:$0xf]
    %v317 = vld [vmem:[#allocation8 + $0x2c] sm:$0xf]
    %v318 = vld [vmem:[#allocation8 + $0x30] sm:$0xf]
    %v319 = vld [vmem:[#allocation8 + $0x34] sm:$0xf]
    %v320 = vld [vmem:[#allocation8 + $0x38] sm:$0xf]
    %v321 = vld [vmem:[#allocation8 + $0x3c] sm:$0xf]
    %v338 = vunpack.c.l.b16 %v306
    %v339 = vunpack.c.l.b16 %v307
    %v340 = vunpack.c.l.b16 %v308
    %v341 = vunpack.c.l.b16 %v309
    %v342 = vunpack.c.l.b16 %v310
    %v343 = vunpack.c.l.b16 %v311
    %v344 = vunpack.c.l.b16 %v312
    %v345 = vunpack.c.l.b16 %v313
    %v346 = vunpack.c.l.b16 %v314
    %v347 = vunpack.c.l.b16 %v315
    %v348 = vunpack.c.l.b16 %v316
    %v349 = vunpack.c.l.b16 %v317
    %v350 = vunpack.c.l.b16 %v318
    %v351 = vunpack.c.l.b16 %v319
    %v352 = vunpack.c.l.b16 %v320
    %v353 = vunpack.c.l.b16 %v321
    %v354 = vpack.c.b16 %v339, %v338
    %v355 = vpack.c.b16 %v341, %v340
    %v356 = vpack.c.b16 %v343, %v342
    %v357 = vpack.c.b16 %v345, %v344
    %v358 = vpack.c.b16 %v347, %v346
    %v359 = vpack.c.b16 %v349, %v348
    %v360 = vpack.c.b16 %v351, %v350
    %v361 = vpack.c.b16 %v353, %v352
    %370 = vmatprep.subr.bf16.mxu0 0
    %371 = vmatpush1.bf16.msra.mxu0 %v361
    %372 = vmatprep.subr.bf16.mxu0 0
    %373 = vmatpush1.bf16.msra.mxu0 %v360
    %374 = vmatprep.subr.bf16.mxu0 0
    %375 = vmatpush1.bf16.msra.mxu0 %v359
    %376 = vmatprep.subr.bf16.mxu0 0
    %377 = vmatpush1.bf16.msra.mxu0 %v358
    %378 = vmatprep.subr.bf16.mxu0 0
    %379 = vmatpush1.bf16.msra.mxu0 %v357
    %380 = vmatprep.subr.bf16.mxu0 0
    %381 = vmatpush1.bf16.msra.mxu0 %v356
    %382 = vmatprep.subr.bf16.mxu0 0
    %383 = vmatpush1.bf16.msra.mxu0 %v355
    %384 = vmatprep.subr.bf16.mxu0 0
    %385 = vmatpush1.bf16.msra.mxu0 %v354
    %386 = vmatprep.subr.bf16.mxu0 0
    %387 = vmatpush2.bf16.msra.mxu0 0
    %388 = vmatprep.subr.bf16.mxu0 0
    %389 = vmatpush2.bf16.msra.mxu0 0
    %390 = vmatprep.subr.bf16.mxu0 0
    %391 = vmatpush2.bf16.msra.mxu0 0
    %392 = vmatprep.subr.bf16.mxu0 0
    %393 = vmatpush2.bf16.msra.mxu0 0
    %394 = vmatprep.subr.bf16.mxu0 0
    %395 = vmatpush2.bf16.msra.mxu0 0
    %396 = vmatprep.subr.bf16.mxu0 0
    %397 = vmatpush2.bf16.msra.mxu0 0
    %398 = vmatprep.subr.bf16.mxu0 0
    %399 = vmatpush2.bf16.msra.mxu0 0
    %400 = vmatprep.subr.bf16.mxu0 0
    %401 = vmatpush2.bf16.msra.mxu0 0
    %402 = vmatprep.mubr.bf16.mxu0 0
    %403 = vmatmul.mubr.bf16.gmra.mxu0 %v305
    %v404 = vpop.f32.mrf.mxu0
    %v405 = vadd.f32 0.0, %v404
    %v406 = vpop.f32.mrf.mxu0
    %v407 = vpop.f32.mrf.mxu0
    %v408 = vpop.f32.mrf.mxu0
    %409 = vdwg.mxu0
    %410 = vst [vmem:[#allocation10] sm:$0xff] %v405
    // Predicated region
    $region42: #{_fused_call.1} parent=1 // pred_check
      _
    $region43: #{_fused_call.1} parent=1 // pred_check_branch
      %412 = sbr.rel (0) target = $region45
    $region44: #{_fused_call.1} parent=1 // pred_region
      %s414 = ssub.s32 128, 128
      %415 = vsyncadd [#allocation4], %s414
      %s417 = sshll.u32 [#allocation10], 4
      %s418 = int_to_ptr.vmem [resolvable:$true] %s417
      %420 = dma.vmem_to_hbm [thread:$0]  %s418, 128, %s6, [#allocation4]
    $region45: #{_fused_call.1} parent=1 // pred_fallthru
      _
    // Predicated region
    $region46: #{_fused_call.1} parent=1 // pred_check
      _
    $region47: #{_fused_call.1} parent=1 // pred_check_branch
      %422 = sbr.rel (0) target = $region49
    $region48: #{_fused_call.1} parent=1 // pred_region
      %423 = dma.done [#allocation4], 128
    $region49: #{_fused_call.1} parent=1 // pred_fallthru
      _
    %424 = vsyncpa [#allocation3], 1
    %425 = vsyncpa [#allocation6], 1
    %426 = vsyncpa [#allocation9], 1
    %427 = vsyncpa [#allocation4], 1

</llo_original>
